<compile_context>
chip_gen: v5e
topology: v5e:2x2
jax: 0.10.0
libtpu: 0.0.40
codegen_flags: <defaults>
</compile_context>

<pallas_src>
import functools

import jax
import jax.numpy as jnp
from jax import lax
from jax.experimental import pallas as pl
from jax.experimental.pallas import tpu as pltpu

LN_EPS = 1e-5            # torch.nn.LayerNorm default eps
_LANE = 128              # TPU lane width
_MAX_BATCH_TILE = 512    # rows per grid step (fp32 activations)


def _round_up(x, m):
    return ((x + m - 1) // m) * m


# ----------------------------------------------------------------------------
# Fused kernel
# ----------------------------------------------------------------------------
def _make_probe_kernel(num_hidden: int):
    """Builds the fused kernel for a fixed (static) number of hidden blocks."""

    def kernel(*refs):
        # refs = x, (w, b, gamma, beta) * num_hidden, w_out, b_out, out
        x_ref = refs[0]
        o_ref = refs[-1]
        h = x_ref[...]                                    # (TB, D_in) fp32
        p = 1
        for _ in range(num_hidden):                       # static Python loop
            w_ref, b_ref, g_ref, beta_ref = refs[p:p + 4]
            p += 4
            # Linear: bf16 MXU operands, fp32 accumulate.
            y = jnp.dot(h.astype(jnp.bfloat16),
                        w_ref[...].astype(jnp.bfloat16),
                        preferred_element_type=jnp.float32) + b_ref[...]
            # Tanh + LayerNorm in fp32 (biased variance, eps inside rsqrt,
            # matching torch.nn.LayerNorm).
            t = jnp.tanh(y)
            mean = jnp.mean(t, axis=-1, keepdims=True)
            c = t - mean
            var = jnp.mean(c * c, axis=-1, keepdims=True)
            h = c * lax.rsqrt(var + LN_EPS) * g_ref[...] + beta_ref[...]
            # nn.Dropout -> identity in eval mode.
        w_out_ref, b_out_ref = refs[p], refs[p + 1]
        o_ref[...] = (jnp.dot(h.astype(jnp.bfloat16),
                              w_out_ref[...].astype(jnp.bfloat16),
                              preferred_element_type=jnp.float32)
                      + b_out_ref[...])

    return kernel


# ----------------------------------------------------------------------------
# Wrapper
# ----------------------------------------------------------------------------
def onehot_mlp_probe_forward(params, x):
    batch, input_dim = x.shape
    hidden = params["hidden"]
    w_out, b_out = params["out"]             # already lane-padded to n_pad cols
    num_labels = params["num_labels"]
    n_pad = w_out.shape[1]
    num_hidden = len(hidden)
    mlp_dim = hidden[0][0].shape[1]

    # Batch tile: full batch if small (block == full dim is always legal),
    # otherwise a large multiple-of-8 tile for pipelined DMA.
    tb = batch if batch <= _MAX_BATCH_TILE else _MAX_BATCH_TILE
    grid = (pl.cdiv(batch, tb),)

    tile_map = lambda i: (i, 0)              # batch-tiled operands
    const_map = lambda i: (0, 0)             # VMEM-resident params

    flat_args = [x]
    in_specs = [pl.BlockSpec((tb, input_dim), tile_map)]
    for arrs in hidden:
        for a in arrs:
            flat_args.append(a)
            in_specs.append(pl.BlockSpec(a.shape, const_map))
    for a in (w_out, b_out):
        flat_args.append(a)
        in_specs.append(pl.BlockSpec(a.shape, const_map))
    out_spec = pl.BlockSpec((tb, n_pad), tile_map)

    # Explicit VMEM budget: resident weights (x2 safety), double-buffered
    # batch tiles, and elementwise temporaries; clamp to [32, 64] MiB so the
    # setting is valid on v5e/v6e (128 MiB) and v7x (64 MiB per TC).
    weight_bytes = sum(a.size * a.dtype.itemsize for arrs in hidden for a in arrs)
    weight_bytes += w_out.size * w_out.dtype.itemsize
    weight_bytes += b_out.size * b_out.dtype.itemsize
    act_bytes = 2 * tb * (input_dim + n_pad) * 4
    tmp_bytes = 6 * tb * max(input_dim, mlp_dim, n_pad) * 4
    budget = 2 * weight_bytes + act_bytes + tmp_bytes + (4 << 20)
    vmem_limit = int(min(max(budget, 32 << 20), 64 << 20))

    out = pl.pallas_call(
        _make_probe_kernel(num_hidden),
        out_shape=jax.ShapeDtypeStruct((batch, n_pad), jnp.float32),
        grid=grid,
        in_specs=in_specs,
        out_specs=out_spec,
        compiler_params=pltpu.CompilerParams(
            dimension_semantics=("parallel",),   # shard batch tiles on v7x 2xTC
            vmem_limit_bytes=vmem_limit),
    )(*flat_args)
    # Drop the lane padding outside the kernel.
    return out[:, :num_labels]


# ----------------------------------------------------------------------------
# Parameter construction (mirrors nn.Linear / nn.LayerNorm default init)
# ----------------------------------------------------------------------------
def init_params(key, input_dim, num_labels, mlp_layers, mlp_dim):
    if mlp_layers < 1:
        raise ValueError("mlp_layers must be a positive integer")

    def linear_init(k, fan_in, fan_out):
        kw, kb = jax.random.split(k)
        bound = 1.0 / jnp.sqrt(jnp.float32(fan_in))
        w = jax.random.uniform(kw, (fan_in, fan_out), jnp.float32, -bound, bound)
        b = jax.random.uniform(kb, (1, fan_out), jnp.float32, -bound, bound)
        return w, b

    keys = jax.random.split(key, mlp_layers + 1)
    hidden = []
    fan_in = input_dim
    for i in range(mlp_layers):
        w, b = linear_init(keys[i], fan_in, mlp_dim)
        gamma = jnp.ones((1, mlp_dim), jnp.float32)
        beta = jnp.zeros((1, mlp_dim), jnp.float32)
        hidden.append((w, b, gamma, beta))
        fan_in = mlp_dim

    # Output layer, zero-padded on the N axis to a lane-dense width.
    w_o, b_o = linear_init(keys[-1], mlp_dim, num_labels)
    n_pad = _round_up(max(num_labels, _LANE), _LANE)
    w_out = jnp.zeros((mlp_dim, n_pad), jnp.float32).at[:, :num_labels].set(w_o)
    b_out = jnp.zeros((1, n_pad), jnp.float32).at[:, :num_labels].set(b_o)

    return {"hidden": hidden, "out": (w_out, b_out), "num_labels": num_labels}


# ----------------------------------------------------------------------------
# Pure-JAX fp32 reference (for correctness check; padding columns are zero so
# the padded output matmul equals the unpadded one on the first num_labels).
# ----------------------------------------------------------------------------
def reference_forward(params, x):
    h = x
    for (w, b, gamma, beta) in params["hidden"]:
        y = jnp.tanh(h @ w + b)
        mean = jnp.mean(y, axis=-1, keepdims=True)
        var = jnp.mean((y - mean) ** 2, axis=-1, keepdims=True)
        h = (y - mean) / jnp.sqrt(var + LN_EPS) * gamma + beta
    w_out, b_out = params["out"]
    return (h @ w_out + b_out)[:, :params["num_labels"]]


if __name__ == "__main__":
    # Small deterministic example: x is [batch, input_dim].
    batch, input_dim, mlp_dim, num_labels, mlp_layers = 8, 32, 256, 5, 2

    key = jax.random.PRNGKey(0)
    k_params, k_x = jax.random.split(key)
    params = init_params(k_params, input_dim, num_labels, mlp_layers, mlp_dim)
    x = jax.random.normal(k_x, (batch, input_dim), jnp.float32)

    fwd = jax.jit(functools.partial(onehot_mlp_probe_forward, params))
    out = fwd(x)
    jax.block_until_ready(out)

    ref = reference_forward(params, x)
    assert out.shape == (batch, num_labels)
    # bf16 MXU operands (fp32 accumulate) vs pure fp32 reference -> loose tol.
    assert jnp.allclose(out, ref, atol=5e-2, rtol=5e-2), float(
        jnp.max(jnp.abs(out - ref)))
    print("KERNEL_OK")
</pallas_src>

<mosaic_0001>
module attributes {stable_mosaic.version = 11 : i64} {
  func.func @kernel(%arg0: i32, %arg1: memref<8x32xf32, #tpu.memory_space<vmem>>, %arg2: memref<32x256xf32, #tpu.memory_space<vmem>>, %arg3: memref<1x256xf32, #tpu.memory_space<vmem>>, %arg4: memref<1x256xf32, #tpu.memory_space<vmem>>, %arg5: memref<1x256xf32, #tpu.memory_space<vmem>>, %arg6: memref<256x256xf32, #tpu.memory_space<vmem>>, %arg7: memref<1x256xf32, #tpu.memory_space<vmem>>, %arg8: memref<1x256xf32, #tpu.memory_space<vmem>>, %arg9: memref<1x256xf32, #tpu.memory_space<vmem>>, %arg10: memref<256x128xf32, #tpu.memory_space<vmem>>, %arg11: memref<1x128xf32, #tpu.memory_space<vmem>>, %arg12: memref<8x128xf32, #tpu.memory_space<vmem>>) attributes {dimension_semantics = [#tpu.dimension_semantics<parallel>], iteration_bounds = array<i64: 1>, scalar_prefetch = 0 : i64, scratch_operands = 0 : i64, tpu.core_type = #tpu.core_type<tc>, window_params = [{transform_indices = @transform_0, window_bounds = array<i64: 8, 32>}, {pipeline_mode = #tpu.pipeline_mode<synchronous>, transform_indices = @transform_1, window_bounds = array<i64: 32, 256>}, {pipeline_mode = #tpu.pipeline_mode<synchronous>, transform_indices = @transform_2, window_bounds = array<i64: 1, 256>}, {pipeline_mode = #tpu.pipeline_mode<synchronous>, transform_indices = @transform_3, window_bounds = array<i64: 1, 256>}, {pipeline_mode = #tpu.pipeline_mode<synchronous>, transform_indices = @transform_4, window_bounds = array<i64: 1, 256>}, {pipeline_mode = #tpu.pipeline_mode<synchronous>, transform_indices = @transform_5, window_bounds = array<i64: 256, 256>}, {pipeline_mode = #tpu.pipeline_mode<synchronous>, transform_indices = @transform_6, window_bounds = array<i64: 1, 256>}, {pipeline_mode = #tpu.pipeline_mode<synchronous>, transform_indices = @transform_7, window_bounds = array<i64: 1, 256>}, {pipeline_mode = #tpu.pipeline_mode<synchronous>, transform_indices = @transform_8, window_bounds = array<i64: 1, 256>}, {pipeline_mode = #tpu.pipeline_mode<synchronous>, transform_indices = @transform_9, window_bounds = array<i64: 256, 128>}, {pipeline_mode = #tpu.pipeline_mode<synchronous>, transform_indices = @transform_10, window_bounds = array<i64: 1, 128>}, {transform_indices = @transform_11, window_bounds = array<i64: 8, 128>}]} {
    %c0 = arith.constant 0 : index
    %c0_0 = arith.constant 0 : index
    %0 = vector.load %arg1[%c0, %c0_0] : memref<8x32xf32, #tpu.memory_space<vmem>>, vector<8x32xf32>
    %1 = arith.truncf %0 : vector<8x32xf32> to vector<8x32xbf16>
    %c0_1 = arith.constant 0 : index
    %c0_2 = arith.constant 0 : index
    %2 = vector.load %arg2[%c0_1, %c0_2] : memref<32x256xf32, #tpu.memory_space<vmem>>, vector<32x256xf32>
    %3 = arith.truncf %2 : vector<32x256xf32> to vector<32x256xbf16>
    %cst = arith.constant dense<0.000000e+00> : vector<8x256xf32>
    %4 = tpu.matmul %1, %3, %cst {dimension_numbers = #tpu.dot_dimension_numbers<[1], [0], [0], [1], [0, 0, 1, 1], [], []>} : vector<8x32xbf16>, vector<32x256xbf16>, vector<8x256xf32> -> vector<8x256xf32>
    %c0_3 = arith.constant 0 : index
    %c0_4 = arith.constant 0 : index
    %5 = vector.load %arg3[%c0_3, %c0_4] : memref<1x256xf32, #tpu.memory_space<vmem>>, vector<1x256xf32>
    %6 = vector.broadcast %5 : vector<1x256xf32> to vector<8x256xf32>
    %7 = arith.addf %4, %6 : vector<8x256xf32>
    %8 = math.tanh %7 : vector<8x256xf32>
    %cst_5 = arith.constant dense<0.000000e+00> : vector<8xf32>
    %9 = vector.multi_reduction <add>, %8, %cst_5 [1] : vector<8x256xf32> to vector<8xf32>
    %10 = vector.shape_cast %9 : vector<8xf32> to vector<8x1xf32>
    %cst_6 = arith.constant 2.560000e+02 : f32
    %11 = vector.broadcast %cst_6 : f32 to vector<8x1xf32>
    %12 = arith.divf %10, %11 : vector<8x1xf32>
    %13 = vector.broadcast %12 : vector<8x1xf32> to vector<8x256xf32>
    %14 = arith.subf %8, %13 : vector<8x256xf32>
    %15 = arith.mulf %14, %14 : vector<8x256xf32>
    %cst_7 = arith.constant dense<0.000000e+00> : vector<8xf32>
    %16 = vector.multi_reduction <add>, %15, %cst_7 [1] : vector<8x256xf32> to vector<8xf32>
    %17 = vector.shape_cast %16 : vector<8xf32> to vector<8x1xf32>
    %cst_8 = arith.constant 2.560000e+02 : f32
    %18 = vector.broadcast %cst_8 : f32 to vector<8x1xf32>
    %19 = arith.divf %17, %18 : vector<8x1xf32>
    %cst_9 = arith.constant 9.99999974E-6 : f32
    %20 = vector.broadcast %cst_9 : f32 to vector<8x1xf32>
    %21 = arith.addf %19, %20 : vector<8x1xf32>
    %22 = math.rsqrt %21 : vector<8x1xf32>
    %23 = vector.broadcast %22 : vector<8x1xf32> to vector<8x256xf32>
    %24 = arith.mulf %14, %23 : vector<8x256xf32>
    %c0_10 = arith.constant 0 : index
    %c0_11 = arith.constant 0 : index
    %25 = vector.load %arg4[%c0_10, %c0_11] : memref<1x256xf32, #tpu.memory_space<vmem>>, vector<1x256xf32>
    %26 = vector.broadcast %25 : vector<1x256xf32> to vector<8x256xf32>
    %27 = arith.mulf %24, %26 : vector<8x256xf32>
    %c0_12 = arith.constant 0 : index
    %c0_13 = arith.constant 0 : index
    %28 = vector.load %arg5[%c0_12, %c0_13] : memref<1x256xf32, #tpu.memory_space<vmem>>, vector<1x256xf32>
    %29 = vector.broadcast %28 : vector<1x256xf32> to vector<8x256xf32>
    %30 = arith.addf %27, %29 : vector<8x256xf32>
    %31 = arith.truncf %30 : vector<8x256xf32> to vector<8x256xbf16>
    %c0_14 = arith.constant 0 : index
    %c0_15 = arith.constant 0 : index
    %32 = vector.load %arg6[%c0_14, %c0_15] : memref<256x256xf32, #tpu.memory_space<vmem>>, vector<256x256xf32>
    %33 = arith.truncf %32 : vector<256x256xf32> to vector<256x256xbf16>
    %cst_16 = arith.constant dense<0.000000e+00> : vector<8x256xf32>
    %34 = tpu.matmul %31, %33, %cst_16 {dimension_numbers = #tpu.dot_dimension_numbers<[1], [0], [0], [1], [0, 0, 1, 1], [], []>} : vector<8x256xbf16>, vector<256x256xbf16>, vector<8x256xf32> -> vector<8x256xf32>
    %c0_17 = arith.constant 0 : index
    %c0_18 = arith.constant 0 : index
    %35 = vector.load %arg7[%c0_17, %c0_18] : memref<1x256xf32, #tpu.memory_space<vmem>>, vector<1x256xf32>
    %36 = vector.broadcast %35 : vector<1x256xf32> to vector<8x256xf32>
    %37 = arith.addf %34, %36 : vector<8x256xf32>
    %38 = math.tanh %37 : vector<8x256xf32>
    %cst_19 = arith.constant dense<0.000000e+00> : vector<8xf32>
    %39 = vector.multi_reduction <add>, %38, %cst_19 [1] : vector<8x256xf32> to vector<8xf32>
    %40 = vector.shape_cast %39 : vector<8xf32> to vector<8x1xf32>
    %cst_20 = arith.constant 2.560000e+02 : f32
    %41 = vector.broadcast %cst_20 : f32 to vector<8x1xf32>
    %42 = arith.divf %40, %41 : vector<8x1xf32>
    %43 = vector.broadcast %42 : vector<8x1xf32> to vector<8x256xf32>
    %44 = arith.subf %38, %43 : vector<8x256xf32>
    %45 = arith.mulf %44, %44 : vector<8x256xf32>
    %cst_21 = arith.constant dense<0.000000e+00> : vector<8xf32>
    %46 = vector.multi_reduction <add>, %45, %cst_21 [1] : vector<8x256xf32> to vector<8xf32>
    %47 = vector.shape_cast %46 : vector<8xf32> to vector<8x1xf32>
    %cst_22 = arith.constant 2.560000e+02 : f32
    %48 = vector.broadcast %cst_22 : f32 to vector<8x1xf32>
    %49 = arith.divf %47, %48 : vector<8x1xf32>
    %cst_23 = arith.constant 9.99999974E-6 : f32
    %50 = vector.broadcast %cst_23 : f32 to vector<8x1xf32>
    %51 = arith.addf %49, %50 : vector<8x1xf32>
    %52 = math.rsqrt %51 : vector<8x1xf32>
    %53 = vector.broadcast %52 : vector<8x1xf32> to vector<8x256xf32>
    %54 = arith.mulf %44, %53 : vector<8x256xf32>
    %c0_24 = arith.constant 0 : index
    %c0_25 = arith.constant 0 : index
    %55 = vector.load %arg8[%c0_24, %c0_25] : memref<1x256xf32, #tpu.memory_space<vmem>>, vector<1x256xf32>
    %56 = vector.broadcast %55 : vector<1x256xf32> to vector<8x256xf32>
    %57 = arith.mulf %54, %56 : vector<8x256xf32>
    %c0_26 = arith.constant 0 : index
    %c0_27 = arith.constant 0 : index
    %58 = vector.load %arg9[%c0_26, %c0_27] : memref<1x256xf32, #tpu.memory_space<vmem>>, vector<1x256xf32>
    %59 = vector.broadcast %58 : vector<1x256xf32> to vector<8x256xf32>
    %60 = arith.addf %57, %59 : vector<8x256xf32>
    %61 = arith.truncf %60 : vector<8x256xf32> to vector<8x256xbf16>
    %c0_28 = arith.constant 0 : index
    %c0_29 = arith.constant 0 : index
    %62 = vector.load %arg10[%c0_28, %c0_29] : memref<256x128xf32, #tpu.memory_space<vmem>>, vector<256x128xf32>
    %63 = arith.truncf %62 : vector<256x128xf32> to vector<256x128xbf16>
    %cst_30 = arith.constant dense<0.000000e+00> : vector<8x128xf32>
    %64 = tpu.matmul %61, %63, %cst_30 {dimension_numbers = #tpu.dot_dimension_numbers<[1], [0], [0], [1], [0, 0, 1, 1], [], []>} : vector<8x256xbf16>, vector<256x128xbf16>, vector<8x128xf32> -> vector<8x128xf32>
    %c0_31 = arith.constant 0 : index
    %c0_32 = arith.constant 0 : index
    %65 = vector.load %arg11[%c0_31, %c0_32] : memref<1x128xf32, #tpu.memory_space<vmem>>, vector<1x128xf32>
    %66 = vector.broadcast %65 : vector<1x128xf32> to vector<8x128xf32>
    %67 = arith.addf %64, %66 : vector<8x128xf32>
    %c0_33 = arith.constant 0 : index
    %c0_34 = arith.constant 0 : index
    %68 = vector.load %arg12[%c0_33, %c0_34] : memref<8x128xf32, #tpu.memory_space<vmem>>, vector<8x128xf32>
    tpu.vector_store %arg12[%c0_33, %c0_34], %67 {strides = array<i32>} : memref<8x128xf32, #tpu.memory_space<vmem>>, vector<8x128xf32>,
    return
  }
  func.func @transform_0(%arg0: i32) -> (i32, i32) {
    %c0_i32 = arith.constant 0 : i32
    %c0_i32_0 = arith.constant 0 : i32
    return %arg0, %c0_i32 : i32, i32
  }
  func.func @transform_1(%arg0: i32) -> (i32, i32) {
    %c0_i32 = arith.constant 0 : i32
    %c0_i32_0 = arith.constant 0 : i32
    %c0_i32_1 = arith.constant 0 : i32
    return %c0_i32, %c0_i32_0 : i32, i32
  }
  func.func @transform_2(%arg0: i32) -> (i32, i32) {
    %c0_i32 = arith.constant 0 : i32
    %c0_i32_0 = arith.constant 0 : i32
    %c0_i32_1 = arith.constant 0 : i32
    return %c0_i32, %c0_i32_0 : i32, i32
  }
  func.func @transform_3(%arg0: i32) -> (i32, i32) {
    %c0_i32 = arith.constant 0 : i32
    %c0_i32_0 = arith.constant 0 : i32
    %c0_i32_1 = arith.constant 0 : i32
    return %c0_i32, %c0_i32_0 : i32, i32
  }
  func.func @transform_4(%arg0: i32) -> (i32, i32) {
    %c0_i32 = arith.constant 0 : i32
    %c0_i32_0 = arith.constant 0 : i32
    %c0_i32_1 = arith.constant 0 : i32
    return %c0_i32, %c0_i32_0 : i32, i32
  }
  func.func @transform_5(%arg0: i32) -> (i32, i32) {
    %c0_i32 = arith.constant 0 : i32
    %c0_i32_0 = arith.constant 0 : i32
    %c0_i32_1 = arith.constant 0 : i32
    return %c0_i32, %c0_i32_0 : i32, i32
  }
  func.func @transform_6(%arg0: i32) -> (i32, i32) {
    %c0_i32 = arith.constant 0 : i32
    %c0_i32_0 = arith.constant 0 : i32
    %c0_i32_1 = arith.constant 0 : i32
    return %c0_i32, %c0_i32_0 : i32, i32
  }
  func.func @transform_7(%arg0: i32) -> (i32, i32) {
    %c0_i32 = arith.constant 0 : i32
    %c0_i32_0 = arith.constant 0 : i32
    %c0_i32_1 = arith.constant 0 : i32
    return %c0_i32, %c0_i32_0 : i32, i32
  }
  func.func @transform_8(%arg0: i32) -> (i32, i32) {
    %c0_i32 = arith.constant 0 : i32
    %c0_i32_0 = arith.constant 0 : i32
    %c0_i32_1 = arith.constant 0 : i32
    return %c0_i32, %c0_i32_0 : i32, i32
  }
  func.func @transform_9(%arg0: i32) -> (i32, i32) {
    %c0_i32 = arith.constant 0 : i32
    %c0_i32_0 = arith.constant 0 : i32
    %c0_i32_1 = arith.constant 0 : i32
    return %c0_i32, %c0_i32_0 : i32, i32
  }
  func.func @transform_10(%arg0: i32) -> (i32, i32) {
    %c0_i32 = arith.constant 0 : i32
    %c0_i32_0 = arith.constant 0 : i32
    %c0_i32_1 = arith.constant 0 : i32
    return %c0_i32, %c0_i32_0 : i32, i32
  }
  func.func @transform_11(%arg0: i32) -> (i32, i32) {
    %c0_i32 = arith.constant 0 : i32
    %c0_i32_0 = arith.constant 0 : i32
    return %arg0, %c0_i32 : i32, i32
  }
}

</mosaic_0001>

<llo_original>
// kernel: onehot_mlp_probe_forward.1
$region0: #{onehot_mlp_probe_forward.1}
  #allocation0 [shape = 'u32[]', space=smem, size = 0x4, offset = 0x4, fixed_abs, tag = 'smem constant byte address 0x4 - core index']
  #allocation1 [shape = 'u32[72,128]{1,0:T(1,128)}', space=vmem, size = 0x9000, scoped, tag = 'internal scratch']
  %s0 = inlined_call_operand.hbm [shape: f32[8,32], index: 0, kind: input, shape index: {}]
  %s1 = inlined_call_operand.hbm [shape: f32[32,256], index: 1, kind: input, shape index: {}]
  %s2 = inlined_call_operand.vmem [shape: f32[1,256], index: 2, kind: input, shape index: {}]
  %s3 = inlined_call_operand.vmem [shape: f32[1,256], index: 3, kind: input, shape index: {}, may-alias: {3,7}]
  %s4 = inlined_call_operand.vmem [shape: f32[1,256], index: 4, kind: input, shape index: {}, may-alias: {4,8}]
  %s5 = inlined_call_operand.hbm [shape: f32[256,256], index: 5, kind: input, shape index: {}]
  %s6 = inlined_call_operand.vmem [shape: f32[1,256], index: 6, kind: input, shape index: {}]
  %s7 = inlined_call_operand.vmem [shape: f32[1,256], index: 7, kind: input, shape index: {}, may-alias: {3,7}]
  %s8 = inlined_call_operand.vmem [shape: f32[1,256], index: 8, kind: input, shape index: {}, may-alias: {4,8}]
  %s9 = inlined_call_operand.hbm [shape: f32[256,128], index: 9, kind: input, shape index: {}]
  %s10 = inlined_call_operand.vmem [shape: f32[1,128], index: 10, kind: input, shape index: {}]
  %s11 = inlined_call_operand.hbm [shape: f32[8,128], index: 11, kind: output, shape index: {}]
  %s12 = sld [smem:[#allocation0]]
  $region70: #{onehot_mlp_probe_forward.1} parent=0
    _
  %s14 = ssub.s32 1, %s12
  %s15 = scalar_select 0, %s14, %s12
  $region1: #{onehot_mlp_probe_forward.1} parent=0
    #allocation2 [shape = 'u8[4096]{0}', space=vmem, size = 0x1000, scoped, tag = 'input window, operand 0, single buffered']
    #allocation3 [shape = 's32[1]{0}', space=sflag, size = 0x4, scoped, tag = 'scoped memory for onehot_mlp_probe_forward.1']
    #allocation4 [shape = 's32[1]{0}', space=sflag, size = 0x4, scoped, tag = 'scoped memory for onehot_mlp_probe_forward.1']
    #allocation5 [shape = 'u8[32768]{0}', space=vmem, size = 0x8000, scoped, tag = 'input window, operand 1, single buffered']
    #allocation6 [shape = 's32[1]{0}', space=sflag, size = 0x4, scoped, tag = 'scoped memory for onehot_mlp_probe_forward.1']
    #allocation7 [shape = 'u8[262144]{0}', space=vmem, size = 0x40000, scoped, tag = 'input window, operand 5, single buffered']
    #allocation8 [shape = 'u8[131072]{0}', space=vmem, size = 0x20000, scoped, tag = 'input window, operand 9, single buffered']
    #allocation9 [shape = 's32[1]{0}', space=sflag, size = 0x4, scoped, tag = 'scoped memory for onehot_mlp_probe_forward.1']
    #allocation10 [shape = 'u8[4096]{0}', space=vmem, size = 0x1000, scoped, tag = 'output window, operand 0, single buffered']
    %16 = vsyncpa [#allocation3], 0
    %17 = vsyncpa [#allocation6], 0
    %18 = vsyncpa [#allocation9], 0
    %19 = vsyncpa [#allocation4], 0
    // Predicated region
    $region2: #{onehot_mlp_probe_forward.1} parent=1 // pred_check
      _
    $region3: #{onehot_mlp_probe_forward.1} parent=1 // pred_check_branch
      %21 = sbr.rel (0) target = $region5
    $region4: #{onehot_mlp_probe_forward.1} parent=1 // pred_region
      %23 = vsyncadd [#allocation3], 0
      %s25 = sshll.u32 %s0, 4
      %s26 = int_to_ptr.hbm [resolvable:$true] %s25
      %s27 = sshll.u32 [#allocation2], 4
      %s28 = int_to_ptr.vmem [resolvable:$true] %s27
      %30 = dma.hbm_to_vmem [thread:$0]  %s26, 128, %s28, [#allocation3]
    $region5: #{onehot_mlp_probe_forward.1} parent=1 // pred_fallthru
      _
    // Predicated region
    $region6: #{onehot_mlp_probe_forward.1} parent=1 // pred_check
      _
    $region7: #{onehot_mlp_probe_forward.1} parent=1 // pred_check_branch
      %32 = sbr.rel (0) target = $region9
    $region8: #{onehot_mlp_probe_forward.1} parent=1 // pred_region
      %34 = vsyncadd [#allocation6], 0
      %s35 = sshll.u32 %s1, 4
      %s36 = int_to_ptr.hbm [resolvable:$true] %s35
      %s37 = sshll.u32 [#allocation5], 4
      %s38 = int_to_ptr.vmem [resolvable:$true] %s37
      %43 = dma.hbm_to_vmem [thread:$0]  %s36, 1024, %s38, [#allocation6], 256, 256, 16
    $region9: #{onehot_mlp_probe_forward.1} parent=1 // pred_fallthru
      _
    // Predicated region
    $region10: #{onehot_mlp_probe_forward.1} parent=1 // pred_check
      _
    $region11: #{onehot_mlp_probe_forward.1} parent=1 // pred_check_branch
      %45 = sbr.rel (0) target = $region13
    $region12: #{onehot_mlp_probe_forward.1} parent=1 // pred_region
      _
    $region13: #{onehot_mlp_probe_forward.1} parent=1 // pred_fallthru
      _
    // Predicated region
    $region14: #{onehot_mlp_probe_forward.1} parent=1 // pred_check
      _
    $region15: #{onehot_mlp_probe_forward.1} parent=1 // pred_check_branch
      %47 = sbr.rel (0) target = $region17
    $region16: #{onehot_mlp_probe_forward.1} parent=1 // pred_region
      _
    $region17: #{onehot_mlp_probe_forward.1} parent=1 // pred_fallthru
      _
    // Predicated region
    $region18: #{onehot_mlp_probe_forward.1} parent=1 // pred_check
      _
    $region19: #{onehot_mlp_probe_forward.1} parent=1 // pred_check_branch
      %49 = sbr.rel (0) target = $region21
    $region20: #{onehot_mlp_probe_forward.1} parent=1 // pred_region
      _
    $region21: #{onehot_mlp_probe_forward.1} parent=1 // pred_fallthru
      _
    // Predicated region
    $region22: #{onehot_mlp_probe_forward.1} parent=1 // pred_check
      _
    $region23: #{onehot_mlp_probe_forward.1} parent=1 // pred_check_branch
      %51 = sbr.rel (0) target = $region25
    $region24: #{onehot_mlp_probe_forward.1} parent=1 // pred_region
      %53 = vsyncadd [#allocation6], 0
      %s54 = sshll.u32 %s5, 4
      %s55 = int_to_ptr.hbm [resolvable:$true] %s54
      %s56 = sshll.u32 [#allocation7], 4
      %s57 = int_to_ptr.vmem [resolvable:$true] %s56
      %62 = dma.hbm_to_vmem [thread:$0]  %s55, 8192, %s57, [#allocation6], 256, 256, 16
    $region25: #{onehot_mlp_probe_forward.1} parent=1 // pred_fallthru
      _
    // Predicated region
    $region26: #{onehot_mlp_probe_forward.1} parent=1 // pred_check
      _
    $region27: #{onehot_mlp_probe_forward.1} parent=1 // pred_check_branch
      %64 = sbr.rel (0) target = $region29
    $region28: #{onehot_mlp_probe_forward.1} parent=1 // pred_region
      _
    $region29: #{onehot_mlp_probe_forward.1} parent=1 // pred_fallthru
      _
    // Predicated region
    $region30: #{onehot_mlp_probe_forward.1} parent=1 // pred_check
      _
    $region31: #{onehot_mlp_probe_forward.1} parent=1 // pred_check_branch
      %66 = sbr.rel (0) target = $region33
    $region32: #{onehot_mlp_probe_forward.1} parent=1 // pred_region
      _
    $region33: #{onehot_mlp_probe_forward.1} parent=1 // pred_fallthru
      _
    // Predicated region
    $region34: #{onehot_mlp_probe_forward.1} parent=1 // pred_check
      _
    $region35: #{onehot_mlp_probe_forward.1} parent=1 // pred_check_branch
      %68 = sbr.rel (0) target = $region37
    $region36: #{onehot_mlp_probe_forward.1} parent=1 // pred_region
      _
    $region37: #{onehot_mlp_probe_forward.1} parent=1 // pred_fallthru
      _
    // Predicated region
    $region38: #{onehot_mlp_probe_forward.1} parent=1 // pred_check
      _
    $region39: #{onehot_mlp_probe_forward.1} parent=1 // pred_check_branch
      %70 = sbr.rel (0) target = $region41
    $region40: #{onehot_mlp_probe_forward.1} parent=1 // pred_region
      %72 = vsyncadd [#allocation9], 0
      %s73 = sshll.u32 %s9, 4
      %s74 = int_to_ptr.hbm [resolvable:$true] %s73
      %s75 = sshll.u32 [#allocation8], 4
      %s76 = int_to_ptr.vmem [resolvable:$true] %s75
      %81 = dma.hbm_to_vmem [thread:$0]  %s74, 4096, %s76, [#allocation9], 128, 128, 8
    $region41: #{onehot_mlp_probe_forward.1} parent=1 // pred_fallthru
      _
    // Predicated region
    $region42: #{onehot_mlp_probe_forward.1} parent=1 // pred_check
      _
    $region43: #{onehot_mlp_probe_forward.1} parent=1 // pred_check_branch
      %83 = sbr.rel (0) target = $region45
    $region44: #{onehot_mlp_probe_forward.1} parent=1 // pred_region
      _
    $region45: #{onehot_mlp_probe_forward.1} parent=1 // pred_fallthru
      _
    // Predicated region
    $region46: #{onehot_mlp_probe_forward.1} parent=1 // pred_check
      _
    $region47: #{onehot_mlp_probe_forward.1} parent=1 // pred_check_branch
      %85 = sbr.rel (0) target = $region49
    $region48: #{onehot_mlp_probe_forward.1} parent=1 // pred_region
      %87 = dma.done [#allocation3], 128
    $region49: #{onehot_mlp_probe_forward.1} parent=1 // pred_fallthru
      _
    // Predicated region
    $region50: #{onehot_mlp_probe_forward.1} parent=1 // pred_check
      _
    $region51: #{onehot_mlp_probe_forward.1} parent=1 // pred_check_branch
      %89 = sbr.rel (0) target = $region53
    $region52: #{onehot_mlp_probe_forward.1} parent=1 // pred_region
      %91 = dma.done [#allocation6], 1024
    $region53: #{onehot_mlp_probe_forward.1} parent=1 // pred_fallthru
      _
    // Predicated region
    $region54: #{onehot_mlp_probe_forward.1} parent=1 // pred_check
      _
    $region55: #{onehot_mlp_probe_forward.1} parent=1 // pred_check_branch
      %93 = sbr.rel (0) target = $region57
    $region56: #{onehot_mlp_probe_forward.1} parent=1 // pred_region
      %95 = dma.done [#allocation6], 8192
    $region57: #{onehot_mlp_probe_forward.1} parent=1 // pred_fallthru
      _
    // Predicated region
    $region58: #{onehot_mlp_probe_forward.1} parent=1 // pred_check
      _
    $region59: #{onehot_mlp_probe_forward.1} parent=1 // pred_check_branch
      %97 = sbr.rel (0) target = $region61
    $region60: #{onehot_mlp_probe_forward.1} parent=1 // pred_region
      %99 = dma.done [#allocation9], 4096
    $region61: #{onehot_mlp_probe_forward.1} parent=1 // pred_fallthru
      _
    %v101 = vld [vmem:[#allocation2] sm:$0xff]
    %v102 = vpack.c.bf16 %v101, %v101
    %v103 = vld [vmem:[#allocation5] sm:$0xff]
    %v104 = vld [vmem:[#allocation5 + $0x8] sm:$0xff]
    %v105 = vld [vmem:[#allocation5 + $0x10] sm:$0xff]
    %v106 = vld [vmem:[#allocation5 + $0x18] sm:$0xff]
    %v107 = vld [vmem:[#allocation5 + $0x20] sm:$0xff]
    %v108 = vld [vmem:[#allocation5 + $0x28] sm:$0xff]
    %v109 = vld [vmem:[#allocation5 + $0x30] sm:$0xff]
    %v110 = vld [vmem:[#allocation5 + $0x38] sm:$0xff]
    %v111 = vpack.c.bf16 %v105, %v103
    %v112 = vpack.c.bf16 %v106, %v104
    %v113 = vpack.c.bf16 %v109, %v107
    %v114 = vpack.c.bf16 %v110, %v108
    %v115 = vld [vmem:[%s2] sm:$0x3]
    %v117 = vperm.slane %v115, 0
    %v118 = vperm.slane %v115, 1
    %vm121 = vcmask 261120
    %v123 = vsel %vm121, %v102, 0
    %125 = vmatpush.bf16.msra.mxu0 0
    %126 = vmatpush.bf16.msra.mxu0 0
    %127 = vmatpush.bf16.msra.mxu0 0
    %128 = vmatpush.bf16.msra.mxu0 0
    %129 = vmatpush.bf16.msra.mxu0 0
    %130 = vmatpush.bf16.msra.mxu0 0
    %131 = vmatpush.bf16.msra.mxu0 %v113
    %132 = vmatpush.bf16.msra.mxu0 %v111
    %133 = vmatmul.bf16.gmra.mxu0 %v123
    %v134 = vpop.f32.mrf.mxu0
    %v135 = vadd.f32 %v117, %v134
    %v136 = vpop.f32.mrf.mxu0
    %137 = vdwg.mxu0
    %138 = vmatpush.bf16.msra.mxu0 0
    %139 = vmatpush.bf16.msra.mxu0 0
    %140 = vmatpush.bf16.msra.mxu0 0
    %141 = vmatpush.bf16.msra.mxu0 0
    %142 = vmatpush.bf16.msra.mxu0 0
    %143 = vmatpush.bf16.msra.mxu0 0
    %144 = vmatpush.bf16.msra.mxu0 %v114
    %145 = vmatpush.bf16.msra.mxu0 %v112
    %146 = vmatmul.bf16.gmra.mxu0 %v123
    %v147 = vpop.f32.mrf.mxu0
    %v148 = vadd.f32 %v118, %v147
    %v149 = vpop.f32.mrf.mxu0
    %150 = vdwg.mxu0
    %v151 = vtanh.pop %v135
    %v152 = vtanh.pop %v148
    %v153 = vadd.f32 %v151, %v152
    %154 = vadd.xlane.f32.xlu0 %v153
    %v155 = vpop.xlane.xlu0 %154
    %v156 = vrcp.pop 256.0
    %v157 = vmul.f32 256.0, %v156
    %v158 = vsub.f32 1.0, %v157
    %v159 = vmul.f32 %v156, %v158
    %v160 = vadd.f32 %v156, %v159
    %vm161 = vweird.f32 %v156
    %v162 = vsel %vm161, %v156, %v160
    %v163 = vmul.f32 %v155, %v162
    %v164 = vsub.f32 %v151, %v163
    %v165 = vsub.f32 %v152, %v163
    %v166 = vmul.f32 %v164, %v164
    %v167 = vmul.f32 %v165, %v165
    %v168 = vadd.f32 %v166, %v167
    %169 = vadd.xlane.f32.xlu0 %v168
    %v170 = vpop.xlane.xlu0 %169
    %v171 = vmul.f32 %v170, %v162
    %v172 = vadd.f32 %v171, 1e-05
    %v173 = vrsqrt.pop %v172
    %v174 = vmul.f32 %v173, %v172
    %v175 = vmul.f32 %v174, %v173
    %v176 = vmul.f32 0.5, %v175
    %v177 = vsub.f32 1.5, %v176
    %v178 = vmul.f32 %v173, %v177
    %vm179 = vweird.f32 %v172
    %vm180 = vweird.f32 %v173
    %vm181 = vmor %vm179, %vm180
    %v182 = vsel %vm181, %v173, %v178
    %v183 = vmul.f32 %v164, %v182
    %v184 = vmul.f32 %v165, %v182
    %v185 = vld [vmem:[%s3] sm:$0x3]
    %v187 = vperm.slane %v185, 0
    %v188 = vperm.slane %v185, 1
    %v191 = vmul.f32 %v183, %v187
    %v192 = vmul.f32 %v184, %v188
    %v193 = vld [vmem:[%s4] sm:$0x3]
    %v195 = vperm.slane %v193, 0
    %v196 = vperm.slane %v193, 1
    %v199 = vadd.f32 %v191, %v195
    %v200 = vadd.f32 %v192, %v196
    %v201 = vpack.c.bf16 %v199, %v199
    %v202 = vpack.c.bf16 %v200, %v200
    %v203 = vld [vmem:[#allocation7] sm:$0xff]
    %v204 = vld [vmem:[#allocation7 + $0x8] sm:$0xff]
    %v205 = vld [vmem:[#allocation7 + $0x10] sm:$0xff]
    %v206 = vld [vmem:[#allocation7 + $0x18] sm:$0xff]
    %v207 = vld [vmem:[#allocation7 + $0x20] sm:$0xff]
    %v208 = vld [vmem:[#allocation7 + $0x28] sm:$0xff]
    %v209 = vld [vmem:[#allocation7 + $0x30] sm:$0xff]
    %v210 = vld [vmem:[#allocation7 + $0x38] sm:$0xff]
    %v211 = vld [vmem:[#allocation7 + $0x40] sm:$0xff]
    %v212 = vld [vmem:[#allocation7 + $0x48] sm:$0xff]
    %v213 = vld [vmem:[#allocation7 + $0x50] sm:$0xff]
    %v214 = vld [vmem:[#allocation7 + $0x58] sm:$0xff]
    %v215 = vld [vmem:[#allocation7 + $0x60] sm:$0xff]
    %v216 = vld [vmem:[#allocation7 + $0x68] sm:$0xff]
    %v217 = vld [vmem:[#allocation7 + $0x70] sm:$0xff]
    %v218 = vld [vmem:[#allocation7 + $0x78] sm:$0xff]
    %v219 = vld [vmem:[#allocation7 + $0x80] sm:$0xff]
    %v220 = vld [vmem:[#allocation7 + $0x88] sm:$0xff]
    %v221 = vld [vmem:[#allocation7 + $0x90] sm:$0xff]
    %v222 = vld [vmem:[#allocation7 + $0x98] sm:$0xff]
    %v223 = vld [vmem:[#allocation7 + $0xa0] sm:$0xff]
    %v224 = vld [vmem:[#allocation7 + $0xa8] sm:$0xff]
    %v225 = vld [vmem:[#allocation7 + $0xb0] sm:$0xff]
    %v226 = vld [vmem:[#allocation7 + $0xb8] sm:$0xff]
    %v227 = vld [vmem:[#allocation7 + $0xc0] sm:$0xff]
    %v228 = vld [vmem:[#allocation7 + $0xc8] sm:$0xff]
    %v229 = vld [vmem:[#allocation7 + $0xd0] sm:$0xff]
    %v230 = vld [vmem:[#allocation7 + $0xd8] sm:$0xff]
    %v231 = vld [vmem:[#allocation7 + $0xe0] sm:$0xff]
    %v232 = vld [vmem:[#allocation7 + $0xe8] sm:$0xff]
    %v233 = vld [vmem:[#allocation7 + $0xf0] sm:$0xff]
    %v234 = vld [vmem:[#allocation7 + $0xf8] sm:$0xff]
    %v235 = vld [vmem:[#allocation7 + $0x100] sm:$0xff]
    %v236 = vld [vmem:[#allocation7 + $0x108] sm:$0xff]
    %v237 = vld [vmem:[#allocation7 + $0x110] sm:$0xff]
    %v238 = vld [vmem:[#allocation7 + $0x118] sm:$0xff]
    %v239 = vld [vmem:[#allocation7 + $0x120] sm:$0xff]
    %v240 = vld [vmem:[#allocation7 + $0x128] sm:$0xff]
    %v241 = vld [vmem:[#allocation7 + $0x130] sm:$0xff]
    %v242 = vld [vmem:[#allocation7 + $0x138] sm:$0xff]
    %v243 = vld [vmem:[#allocation7 + $0x140] sm:$0xff]
    %v244 = vld [vmem:[#allocation7 + $0x148] sm:$0xff]
    %v245 = vld [vmem:[#allocation7 + $0x150] sm:$0xff]
    %v246 = vld [vmem:[#allocation7 + $0x158] sm:$0xff]
    %v247 = vld [vmem:[#allocation7 + $0x160] sm:$0xff]
    %v248 = vld [vmem:[#allocation7 + $0x168] sm:$0xff]
    %v249 = vld [vmem:[#allocation7 + $0x170] sm:$0xff]
    %v250 = vld [vmem:[#allocation7 + $0x178] sm:$0xff]
    %v251 = vld [vmem:[#allocation7 + $0x180] sm:$0xff]
    %v252 = vld [vmem:[#allocation7 + $0x188] sm:$0xff]
    %v253 = vld [vmem:[#allocation7 + $0x190] sm:$0xff]
    %v254 = vld [vmem:[#allocation7 + $0x198] sm:$0xff]
    %v255 = vld [vmem:[#allocation7 + $0x1a0] sm:$0xff]
    %v256 = vld [vmem:[#allocation7 + $0x1a8] sm:$0xff]
    %v257 = vld [vmem:[#allocation7 + $0x1b0] sm:$0xff]
    %v258 = vld [vmem:[#allocation7 + $0x1b8] sm:$0xff]
    %v259 = vld [vmem:[#allocation7 + $0x1c0] sm:$0xff]
    %v260 = vld [vmem:[#allocation7 + $0x1c8] sm:$0xff]
    %v261 = vld [vmem:[#allocation7 + $0x1d0] sm:$0xff]
    %v262 = vld [vmem:[#allocation7 + $0x1d8] sm:$0xff]
    %v263 = vld [vmem:[#allocation7 + $0x1e0] sm:$0xff]
    %v264 = vld [vmem:[#allocation7 + $0x1e8] sm:$0xff]
    %v265 = vld [vmem:[#allocation7 + $0x1f0] sm:$0xff]
    %v266 = vld [vmem:[#allocation7 + $0x1f8] sm:$0xff]
    %v267 = vpack.c.bf16 %v205, %v203
    %v268 = vpack.c.bf16 %v206, %v204
    %v269 = vpack.c.bf16 %v209, %v207
    %v270 = vpack.c.bf16 %v210, %v208
    %v271 = vpack.c.bf16 %v213, %v211
    %v272 = vpack.c.bf16 %v214, %v212
    %v273 = vpack.c.bf16 %v217, %v215
    %v274 = vpack.c.bf16 %v218, %v216
    %v275 = vpack.c.bf16 %v221, %v219
    %v276 = vpack.c.bf16 %v222, %v220
    %v277 = vpack.c.bf16 %v225, %v223
    %v278 = vpack.c.bf16 %v226, %v224
    %v279 = vpack.c.bf16 %v229, %v227
    %v280 = vpack.c.bf16 %v230, %v228
    %v281 = vpack.c.bf16 %v233, %v231
    %v282 = vpack.c.bf16 %v234, %v232
    %v283 = vpack.c.bf16 %v237, %v235
    %v284 = vpack.c.bf16 %v238, %v236
    %v285 = vpack.c.bf16 %v241, %v239
    %v286 = vpack.c.bf16 %v242, %v240
    %v287 = vpack.c.bf16 %v245, %v243
    %v288 = vpack.c.bf16 %v246, %v244
    %v289 = vpack.c.bf16 %v249, %v247
    %v290 = vpack.c.bf16 %v250, %v248
    %v291 = vpack.c.bf16 %v253, %v251
    %v292 = vpack.c.bf16 %v254, %v252
    %v293 = vpack.c.bf16 %v257, %v255
    %v294 = vpack.c.bf16 %v258, %v256
    %v295 = vpack.c.bf16 %v261, %v259
    %v296 = vpack.c.bf16 %v262, %v260
    %v297 = vpack.c.bf16 %v265, %v263
    %v298 = vpack.c.bf16 %v266, %v264
    %v299 = vld [vmem:[%s6] sm:$0x3]
    %v301 = vperm.slane %v299, 0
    %v302 = vperm.slane %v299, 1
    %305 = vmatpush.bf16.msra.mxu0 %v281
    %306 = vmatpush.bf16.msra.mxu0 %v279
    %307 = vmatpush.bf16.msra.mxu0 %v277
    %308 = vmatpush.bf16.msra.mxu0 %v275
    %309 = vmatpush.bf16.msra.mxu0 %v273
    %310 = vmatpush.bf16.msra.mxu0 %v271
    %311 = vmatpush.bf16.msra.mxu0 %v269
    %312 = vmatpush.bf16.msra.mxu0 %v267
    %313 = vmatmul.bf16.gmra.mxu0 %v201
    %v314 = vpop.f32.mrf.mxu0
    %v315 = vadd.f32 %v301, %v314
    %v316 = vpop.f32.mrf.mxu0
    %317 = vdwg.mxu0
    %318 = vmatpush.bf16.msra.mxu0 %v297
    %319 = vmatpush.bf16.msra.mxu0 %v295
    %320 = vmatpush.bf16.msra.mxu0 %v293
    %321 = vmatpush.bf16.msra.mxu0 %v291
    %322 = vmatpush.bf16.msra.mxu0 %v289
    %323 = vmatpush.bf16.msra.mxu0 %v287
    %324 = vmatpush.bf16.msra.mxu0 %v285
    %325 = vmatpush.bf16.msra.mxu0 %v283
    %326 = vmatmul.bf16.gmra.mxu0 %v202
    %v327 = vpop.f32.mrf.mxu0
    %v328 = vadd.f32 %v315, %v327
    %v329 = vpop.f32.mrf.mxu0
    %330 = vdwg.mxu0
    %331 = vmatpush.bf16.msra.mxu0 %v282
    %332 = vmatpush.bf16.msra.mxu0 %v280
    %333 = vmatpush.bf16.msra.mxu0 %v278
    %334 = vmatpush.bf16.msra.mxu0 %v276
    %335 = vmatpush.bf16.msra.mxu0 %v274
    %336 = vmatpush.bf16.msra.mxu0 %v272
    %337 = vmatpush.bf16.msra.mxu0 %v270
    %338 = vmatpush.bf16.msra.mxu0 %v268
    %339 = vmatmul.bf16.gmra.mxu0 %v201
    %v340 = vpop.f32.mrf.mxu0
    %v341 = vadd.f32 %v302, %v340
    %v342 = vpop.f32.mrf.mxu0
    %343 = vdwg.mxu0
    %344 = vmatpush.bf16.msra.mxu0 %v298
    %345 = vmatpush.bf16.msra.mxu0 %v296
    %346 = vmatpush.bf16.msra.mxu0 %v294
    %347 = vmatpush.bf16.msra.mxu0 %v292
    %348 = vmatpush.bf16.msra.mxu0 %v290
    %349 = vmatpush.bf16.msra.mxu0 %v288
    %350 = vmatpush.bf16.msra.mxu0 %v286
    %351 = vmatpush.bf16.msra.mxu0 %v284
    %352 = vmatmul.bf16.gmra.mxu0 %v202
    %v353 = vpop.f32.mrf.mxu0
    %v354 = vadd.f32 %v341, %v353
    %v355 = vpop.f32.mrf.mxu0
    %356 = vdwg.mxu0
    %v357 = vtanh.pop %v328
    %v358 = vtanh.pop %v354
    %v359 = vadd.f32 %v357, %v358
    %360 = vadd.xlane.f32.xlu0 %v359
    %v361 = vpop.xlane.xlu0 %360
    %v362 = vmul.f32 %v361, %v162
    %v363 = vsub.f32 %v357, %v362
    %v364 = vsub.f32 %v358, %v362
    %v365 = vmul.f32 %v363, %v363
    %v366 = vmul.f32 %v364, %v364
    %v367 = vadd.f32 %v365, %v366
    %368 = vadd.xlane.f32.xlu0 %v367
    %v369 = vpop.xlane.xlu0 %368
    %v370 = vmul.f32 %v369, %v162
    %v371 = vadd.f32 %v370, 1e-05
    %v372 = vrsqrt.pop %v371
    %v373 = vmul.f32 %v372, %v371
    %v374 = vmul.f32 %v373, %v372
    %v375 = vmul.f32 0.5, %v374
    %v376 = vsub.f32 1.5, %v375
    %v377 = vmul.f32 %v372, %v376
    %vm378 = vweird.f32 %v371
    %vm379 = vweird.f32 %v372
    %vm380 = vmor %vm378, %vm379
    %v381 = vsel %vm380, %v372, %v377
    %v382 = vmul.f32 %v363, %v381
    %v383 = vmul.f32 %v364, %v381
    %v384 = vld [vmem:[%s7] sm:$0x3]
    %v386 = vperm.slane %v384, 0
    %v387 = vperm.slane %v384, 1
    %v390 = vmul.f32 %v382, %v386
    %v391 = vmul.f32 %v383, %v387
    %v392 = vld [vmem:[%s8] sm:$0x3]
    %v394 = vperm.slane %v392, 0
    %v395 = vperm.slane %v392, 1
    %v398 = vadd.f32 %v390, %v394
    %v399 = vadd.f32 %v391, %v395
    %v400 = vpack.c.bf16 %v398, %v398
    %v401 = vpack.c.bf16 %v399, %v399
    %v402 = vld [vmem:[#allocation8] sm:$0xff]
    %v403 = vld [vmem:[#allocation8 + $0x8] sm:$0xff]
    %v404 = vld [vmem:[#allocation8 + $0x10] sm:$0xff]
    %v405 = vld [vmem:[#allocation8 + $0x18] sm:$0xff]
    %v406 = vld [vmem:[#allocation8 + $0x20] sm:$0xff]
    %v407 = vld [vmem:[#allocation8 + $0x28] sm:$0xff]
    %v408 = vld [vmem:[#allocation8 + $0x30] sm:$0xff]
    %v409 = vld [vmem:[#allocation8 + $0x38] sm:$0xff]
    %v410 = vld [vmem:[#allocation8 + $0x40] sm:$0xff]
    %v411 = vld [vmem:[#allocation8 + $0x48] sm:$0xff]
    %v412 = vld [vmem:[#allocation8 + $0x50] sm:$0xff]
    %v413 = vld [vmem:[#allocation8 + $0x58] sm:$0xff]
    %v414 = vld [vmem:[#allocation8 + $0x60] sm:$0xff]
    %v415 = vld [vmem:[#allocation8 + $0x68] sm:$0xff]
    %v416 = vld [vmem:[#allocation8 + $0x70] sm:$0xff]
    %v417 = vld [vmem:[#allocation8 + $0x78] sm:$0xff]
    %v418 = vld [vmem:[#allocation8 + $0x80] sm:$0xff]
    %v419 = vld [vmem:[#allocation8 + $0x88] sm:$0xff]
    %v420 = vld [vmem:[#allocation8 + $0x90] sm:$0xff]
    %v421 = vld [vmem:[#allocation8 + $0x98] sm:$0xff]
    %v422 = vld [vmem:[#allocation8 + $0xa0] sm:$0xff]
    %v423 = vld [vmem:[#allocation8 + $0xa8] sm:$0xff]
    %v424 = vld [vmem:[#allocation8 + $0xb0] sm:$0xff]
    %v425 = vld [vmem:[#allocation8 + $0xb8] sm:$0xff]
    %v426 = vld [vmem:[#allocation8 + $0xc0] sm:$0xff]
    %v427 = vld [vmem:[#allocation8 + $0xc8] sm:$0xff]
    %v428 = vld [vmem:[#allocation8 + $0xd0] sm:$0xff]
    %v429 = vld [vmem:[#allocation8 + $0xd8] sm:$0xff]
    %v430 = vld [vmem:[#allocation8 + $0xe0] sm:$0xff]
    %v431 = vld [vmem:[#allocation8 + $0xe8] sm:$0xff]
    %v432 = vld [vmem:[#allocation8 + $0xf0] sm:$0xff]
    %v433 = vld [vmem:[#allocation8 + $0xf8] sm:$0xff]
    %v434 = vpack.c.bf16 %v403, %v402
    %v435 = vpack.c.bf16 %v405, %v404
    %v436 = vpack.c.bf16 %v407, %v406
    %v437 = vpack.c.bf16 %v409, %v408
    %v438 = vpack.c.bf16 %v411, %v410
    %v439 = vpack.c.bf16 %v413, %v412
    %v440 = vpack.c.bf16 %v415, %v414
    %v441 = vpack.c.bf16 %v417, %v416
    %v442 = vpack.c.bf16 %v419, %v418
    %v443 = vpack.c.bf16 %v421, %v420
    %v444 = vpack.c.bf16 %v423, %v422
    %v445 = vpack.c.bf16 %v425, %v424
    %v446 = vpack.c.bf16 %v427, %v426
    %v447 = vpack.c.bf16 %v429, %v428
    %v448 = vpack.c.bf16 %v431, %v430
    %v449 = vpack.c.bf16 %v433, %v432
    %v450 = vld [vmem:[%s10] sm:$0x1]
    %v452 = vperm.slane %v450, 0
    %454 = vmatpush.bf16.msra.mxu0 %v441
    %455 = vmatpush.bf16.msra.mxu0 %v440
    %456 = vmatpush.bf16.msra.mxu0 %v439
    %457 = vmatpush.bf16.msra.mxu0 %v438
    %458 = vmatpush.bf16.msra.mxu0 %v437
    %459 = vmatpush.bf16.msra.mxu0 %v436
    %460 = vmatpush.bf16.msra.mxu0 %v435
    %461 = vmatpush.bf16.msra.mxu0 %v434
    %462 = vmatmul.bf16.gmra.mxu0 %v400
    %v463 = vpop.f32.mrf.mxu0
    %v464 = vadd.f32 %v452, %v463
    %v465 = vpop.f32.mrf.mxu0
    %466 = vdwg.mxu0
    %467 = vmatpush.bf16.msra.mxu0 %v449
    %468 = vmatpush.bf16.msra.mxu0 %v448
    %469 = vmatpush.bf16.msra.mxu0 %v447
    %470 = vmatpush.bf16.msra.mxu0 %v446
    %471 = vmatpush.bf16.msra.mxu0 %v445
    %472 = vmatpush.bf16.msra.mxu0 %v444
    %473 = vmatpush.bf16.msra.mxu0 %v443
    %474 = vmatpush.bf16.msra.mxu0 %v442
    %475 = vmatmul.bf16.gmra.mxu0 %v401
    %v476 = vpop.f32.mrf.mxu0
    %v477 = vadd.f32 %v464, %v476
    %v478 = vpop.f32.mrf.mxu0
    %479 = vdwg.mxu0
    %480 = vst [vmem:[#allocation10] sm:$0xff] %v477
    // Predicated region
    $region62: #{onehot_mlp_probe_forward.1} parent=1 // pred_check
      _
    $region63: #{onehot_mlp_probe_forward.1} parent=1 // pred_check_branch
      %482 = sbr.rel (0) target = $region65
    $region64: #{onehot_mlp_probe_forward.1} parent=1 // pred_region
      %484 = vsyncadd [#allocation4], 0
      %s486 = sshll.u32 [#allocation10], 4
      %s487 = int_to_ptr.vmem [resolvable:$true] %s486
      %s488 = sshll.u32 %s11, 4
      %s489 = int_to_ptr.hbm [resolvable:$true] %s488
      %491 = dma.vmem_to_hbm [thread:$0]  %s487, 128, %s489, [#allocation4]
    $region65: #{onehot_mlp_probe_forward.1} parent=1 // pred_fallthru
      _
    // Predicated region
    $region66: #{onehot_mlp_probe_forward.1} parent=1 // pred_check
      _
    $region67: #{onehot_mlp_probe_forward.1} parent=1 // pred_check_branch
      %493 = sbr.rel (0) target = $region69
    $region68: #{onehot_mlp_probe_forward.1} parent=1 // pred_region
      %495 = dma.done [#allocation4], 128
    $region69: #{onehot_mlp_probe_forward.1} parent=1 // pred_fallthru
      _
    %496 = vsyncpa [#allocation3], 1
    %497 = vsyncpa [#allocation6], 1
    %498 = vsyncpa [#allocation9], 1
    %499 = vsyncpa [#allocation4], 1

</llo_original>
